<compile_context>
chip_gen: v7x
topology: tpu7x:2x2x1
jax: 0.10.0
libtpu: 0.0.40
codegen_flags: <defaults>
</compile_context>

<pallas_src>
import functools

import jax
import jax.numpy as jnp
from jax import lax
from jax.experimental import pallas as pl
from jax.experimental.pallas import tpu as pltpu

LANES = 128
MAX_TILE_ROWS = 512  # 512 x 128 f32 = 256 KiB per block (fits all chips easily)

# murmur3 fmix32 constants (as two's-complement int32) + golden-ratio key mix.
_FMIX_M1 = -2048144789   # 0x85EBCA6B
_FMIX_M2 = -1028477387   # 0xC2B2AE35
_GOLD = -1640531527      # 0x9E3779B9


def _srl(x, n):
    """Logical right shift for int32 (arithmetic shift + mask)."""
    mask = jnp.int32((1 << (32 - n)) - 1)
    return jnp.bitwise_and(jnp.right_shift(x, n), mask)


def _fmix32(x):
    """murmur3 finalizer: good 32-bit avalanche with cheap VALU ops."""
    x = x ^ _srl(x, 16)
    x = x * jnp.int32(_FMIX_M1)
    x = x ^ _srl(x, 13)
    x = x * jnp.int32(_FMIX_M2)
    x = x ^ _srl(x, 16)
    return x


def _rand_bits(counter, key):
    """Counter-based 32-bit hash RNG (two fmix rounds, keyed)."""
    h = _fmix32(counter ^ key)
    return _fmix32(h + key)


# ---------------------------------------------------------------------------
# Kernel: per tile, draw gaussian noise (Box-Muller, both outputs), add, clip.
# ---------------------------------------------------------------------------
def _wgn_kernel(seed_ref, max_ref, x_ref, o_ref, *, sigma, mean):
    i = pl.program_id(0)
    tile_rows = x_ref.shape[0]
    half = (tile_rows + 1) // 2  # uniforms are drawn for half the tile only

    # Unique per-element counters across the whole grid.
    rr = lax.broadcasted_iota(jnp.int32, (half, LANES), 0)
    cc = lax.broadcasted_iota(jnp.int32, (half, LANES), 1)
    ctr = rr * LANES + cc + i * (half * LANES)

    seed = seed_ref[0]
    k1 = (seed + jnp.int32(1)) * jnp.int32(_GOLD)
    k2 = (seed + jnp.int32(2)) * jnp.int32(_GOLD)

    bits1 = _rand_bits(ctr, k1)
    bits2 = _rand_bits(ctr, k2)

    # 24-bit uniforms: u1 in (0,1) (strictly positive for the log), u2 in [0,1).
    inv24 = jnp.float32(1.0 / (1 << 24))
    u1 = (_srl(bits1, 8).astype(jnp.float32) + jnp.float32(0.5)) * inv24
    u2 = _srl(bits2, 8).astype(jnp.float32) * inv24

    # Box-Muller: use BOTH outputs -> one log/sqrt per *pair* of normals.
    r = jnp.sqrt(jnp.float32(-2.0) * jnp.log(u1))
    theta = jnp.float32(2.0 * 3.14159265358979323846) * u2
    z0 = r * jnp.cos(theta)
    z1 = r * jnp.sin(theta)
    z = jnp.concatenate([z0, z1], axis=0)[:tile_rows]

    noise = jnp.float32(mean) + jnp.float32(sigma) * z
    y = x_ref[...].astype(jnp.float32) + noise

    max_v = max_ref[0]
    # torch.clip(x, 0, max_v) == min(max(x, 0), max_v)
    o_ref[...] = jnp.minimum(jnp.maximum(y, jnp.float32(0.0)), max_v)


# ---------------------------------------------------------------------------
# Wrapper: flatten to a lane-dense (rows, 128) slab, launch one Pallas pass.
# ---------------------------------------------------------------------------
def wgn_forward(img, *, amount=0.5, mean=0.0, var=1000.0, seed=1):
    del amount  # present in the PyTorch module but unused by its forward()
    orig_shape = img.shape

    # Global max via XLA (memory-speed reduce); no Pallas max pass needed.
    max_arr = jnp.max(img).astype(jnp.float32).reshape(1)

    flat = img.reshape(-1).astype(jnp.float32)
    n = flat.shape[0]
    rows = -(-n // LANES)
    pad = rows * LANES - n
    if pad:
        # tiny pad (<128 elems) only to reach a lane boundary; sliced away later
        flat = jnp.pad(flat, (0, pad))
    x2d = flat.reshape(rows, LANES)

    tile_rows = rows if rows <= MAX_TILE_ROWS else MAX_TILE_ROWS
    grid = (pl.cdiv(rows, tile_rows),)

    seed_arr = jnp.array([seed], dtype=jnp.int32)
    sigma = float(var) ** 0.5

    out2d = pl.pallas_call(
        functools.partial(_wgn_kernel, sigma=sigma, mean=float(mean)),
        out_shape=jax.ShapeDtypeStruct((rows, LANES), jnp.float32),
        grid=grid,
        in_specs=[
            pl.BlockSpec(memory_space=pltpu.MemorySpace.SMEM),        # seed (1,)
            pl.BlockSpec(memory_space=pltpu.MemorySpace.SMEM),        # max_v (1,)
            pl.BlockSpec((tile_rows, LANES), lambda i: (i, 0)),       # image tile
        ],
        out_specs=pl.BlockSpec((tile_rows, LANES), lambda i: (i, 0)),
        compiler_params=pltpu.CompilerParams(
            dimension_semantics=("parallel",)),
    )(seed_arr, max_arr, x2d)

    return out2d.reshape(-1)[:n].reshape(orig_shape)


if __name__ == "__main__":
    key = jax.random.PRNGKey(0)
    # [..., C, H, W] -> (B, C, H, W), small image-like values in [0, 255).
    img = jax.random.uniform(key, (2, 4, 16, 16), jnp.float32) * 255.0

    out = wgn_forward(img, amount=0.5, mean=0.0, var=1000.0, seed=1)
    out = jax.block_until_ready(out)

    # sanity checks mirroring the reference semantics
    max_v = float(jnp.max(img))
    assert out.shape == img.shape and out.dtype == jnp.float32
    assert float(jnp.min(out)) >= 0.0 - 1e-5
    assert float(jnp.max(out)) <= max_v + 1e-3
    assert bool(jnp.all(jnp.isfinite(out)))

    print("KERNEL_OK")
</pallas_src>

<mosaic_0001>
module attributes {stable_mosaic.version = 11 : i64} {
  func.func @_wgn_kernel(%arg0: i32, %arg1: memref<1xi32, #tpu.memory_space<smem>>, %arg2: memref<1xf32, #tpu.memory_space<smem>>, %arg3: memref<16x128xf32, #tpu.memory_space<vmem>>, %arg4: memref<16x128xf32, #tpu.memory_space<vmem>>) attributes {dimension_semantics = [#tpu.dimension_semantics<parallel>], iteration_bounds = array<i64: 1>, scalar_prefetch = 0 : i64, scratch_operands = 0 : i64, tpu.core_type = #tpu.core_type<tc>, window_params = [{transform_indices = @transform_0, window_bounds = array<i64: 1>}, {transform_indices = @transform_1, window_bounds = array<i64: 1>}, {transform_indices = @transform_2, window_bounds = array<i64: 16, 128>}, {transform_indices = @transform_3, window_bounds = array<i64: 16, 128>}]} {
    %0 = tpu.iota {dimensions = array<i32: 0>} : vector<8x128xi32>
    %1 = tpu.iota {dimensions = array<i32: 1>} : vector<8x128xi32>
    %c128_i32 = arith.constant 128 : i32
    %2 = vector.broadcast %c128_i32 : i32 to vector<8x128xi32>
    %3 = arith.muli %0, %2 : vector<8x128xi32>
    %4 = arith.addi %3, %1 : vector<8x128xi32>
    %c1024_i32 = arith.constant 1024 : i32
    %5 = arith.muli %arg0, %c1024_i32 : i32
    %6 = vector.broadcast %5 : i32 to vector<8x128xi32>
    %7 = arith.addi %4, %6 : vector<8x128xi32>
    %c0 = arith.constant 0 : index
    %8 = memref.load %arg1[%c0] : memref<1xi32, #tpu.memory_space<smem>>
    %c1_i32 = arith.constant 1 : i32
    %9 = arith.addi %8, %c1_i32 : i32
    %c-1640531527_i32 = arith.constant -1640531527 : i32
    %10 = arith.muli %9, %c-1640531527_i32 : i32
    %c2_i32 = arith.constant 2 : i32
    %11 = arith.addi %8, %c2_i32 : i32
    %c-1640531527_i32_0 = arith.constant -1640531527 : i32
    %12 = arith.muli %11, %c-1640531527_i32_0 : i32
    %13 = vector.broadcast %10 : i32 to vector<8x128xi32>
    %14 = arith.xori %7, %13 : vector<8x128xi32>
    %c16_i32 = arith.constant 16 : i32
    %15 = vector.broadcast %c16_i32 : i32 to vector<8x128xi32>
    %16 = arith.shrsi %14, %15 : vector<8x128xi32>
    %c65535_i32 = arith.constant 65535 : i32
    %17 = vector.broadcast %c65535_i32 : i32 to vector<8x128xi32>
    %18 = arith.andi %16, %17 : vector<8x128xi32>
    %19 = arith.xori %14, %18 : vector<8x128xi32>
    %c-2048144789_i32 = arith.constant -2048144789 : i32
    %20 = vector.broadcast %c-2048144789_i32 : i32 to vector<8x128xi32>
    %21 = arith.muli %19, %20 : vector<8x128xi32>
    %c13_i32 = arith.constant 13 : i32
    %22 = vector.broadcast %c13_i32 : i32 to vector<8x128xi32>
    %23 = arith.shrsi %21, %22 : vector<8x128xi32>
    %c524287_i32 = arith.constant 524287 : i32
    %24 = vector.broadcast %c524287_i32 : i32 to vector<8x128xi32>
    %25 = arith.andi %23, %24 : vector<8x128xi32>
    %26 = arith.xori %21, %25 : vector<8x128xi32>
    %c-1028477387_i32 = arith.constant -1028477387 : i32
    %27 = vector.broadcast %c-1028477387_i32 : i32 to vector<8x128xi32>
    %28 = arith.muli %26, %27 : vector<8x128xi32>
    %c16_i32_1 = arith.constant 16 : i32
    %29 = vector.broadcast %c16_i32_1 : i32 to vector<8x128xi32>
    %30 = arith.shrsi %28, %29 : vector<8x128xi32>
    %c65535_i32_2 = arith.constant 65535 : i32
    %31 = vector.broadcast %c65535_i32_2 : i32 to vector<8x128xi32>
    %32 = arith.andi %30, %31 : vector<8x128xi32>
    %33 = arith.xori %28, %32 : vector<8x128xi32>
    %34 = vector.broadcast %10 : i32 to vector<8x128xi32>
    %35 = arith.addi %33, %34 : vector<8x128xi32>
    %c16_i32_3 = arith.constant 16 : i32
    %36 = vector.broadcast %c16_i32_3 : i32 to vector<8x128xi32>
    %37 = arith.shrsi %35, %36 : vector<8x128xi32>
    %c65535_i32_4 = arith.constant 65535 : i32
    %38 = vector.broadcast %c65535_i32_4 : i32 to vector<8x128xi32>
    %39 = arith.andi %37, %38 : vector<8x128xi32>
    %40 = arith.xori %35, %39 : vector<8x128xi32>
    %c-2048144789_i32_5 = arith.constant -2048144789 : i32
    %41 = vector.broadcast %c-2048144789_i32_5 : i32 to vector<8x128xi32>
    %42 = arith.muli %40, %41 : vector<8x128xi32>
    %c13_i32_6 = arith.constant 13 : i32
    %43 = vector.broadcast %c13_i32_6 : i32 to vector<8x128xi32>
    %44 = arith.shrsi %42, %43 : vector<8x128xi32>
    %c524287_i32_7 = arith.constant 524287 : i32
    %45 = vector.broadcast %c524287_i32_7 : i32 to vector<8x128xi32>
    %46 = arith.andi %44, %45 : vector<8x128xi32>
    %47 = arith.xori %42, %46 : vector<8x128xi32>
    %c-1028477387_i32_8 = arith.constant -1028477387 : i32
    %48 = vector.broadcast %c-1028477387_i32_8 : i32 to vector<8x128xi32>
    %49 = arith.muli %47, %48 : vector<8x128xi32>
    %c16_i32_9 = arith.constant 16 : i32
    %50 = vector.broadcast %c16_i32_9 : i32 to vector<8x128xi32>
    %51 = arith.shrsi %49, %50 : vector<8x128xi32>
    %c65535_i32_10 = arith.constant 65535 : i32
    %52 = vector.broadcast %c65535_i32_10 : i32 to vector<8x128xi32>
    %53 = arith.andi %51, %52 : vector<8x128xi32>
    %54 = arith.xori %49, %53 : vector<8x128xi32>
    %55 = vector.broadcast %12 : i32 to vector<8x128xi32>
    %56 = arith.xori %7, %55 : vector<8x128xi32>
    %c16_i32_11 = arith.constant 16 : i32
    %57 = vector.broadcast %c16_i32_11 : i32 to vector<8x128xi32>
    %58 = arith.shrsi %56, %57 : vector<8x128xi32>
    %c65535_i32_12 = arith.constant 65535 : i32
    %59 = vector.broadcast %c65535_i32_12 : i32 to vector<8x128xi32>
    %60 = arith.andi %58, %59 : vector<8x128xi32>
    %61 = arith.xori %56, %60 : vector<8x128xi32>
    %c-2048144789_i32_13 = arith.constant -2048144789 : i32
    %62 = vector.broadcast %c-2048144789_i32_13 : i32 to vector<8x128xi32>
    %63 = arith.muli %61, %62 : vector<8x128xi32>
    %c13_i32_14 = arith.constant 13 : i32
    %64 = vector.broadcast %c13_i32_14 : i32 to vector<8x128xi32>
    %65 = arith.shrsi %63, %64 : vector<8x128xi32>
    %c524287_i32_15 = arith.constant 524287 : i32
    %66 = vector.broadcast %c524287_i32_15 : i32 to vector<8x128xi32>
    %67 = arith.andi %65, %66 : vector<8x128xi32>
    %68 = arith.xori %63, %67 : vector<8x128xi32>
    %c-1028477387_i32_16 = arith.constant -1028477387 : i32
    %69 = vector.broadcast %c-1028477387_i32_16 : i32 to vector<8x128xi32>
    %70 = arith.muli %68, %69 : vector<8x128xi32>
    %c16_i32_17 = arith.constant 16 : i32
    %71 = vector.broadcast %c16_i32_17 : i32 to vector<8x128xi32>
    %72 = arith.shrsi %70, %71 : vector<8x128xi32>
    %c65535_i32_18 = arith.constant 65535 : i32
    %73 = vector.broadcast %c65535_i32_18 : i32 to vector<8x128xi32>
    %74 = arith.andi %72, %73 : vector<8x128xi32>
    %75 = arith.xori %70, %74 : vector<8x128xi32>
    %76 = vector.broadcast %12 : i32 to vector<8x128xi32>
    %77 = arith.addi %75, %76 : vector<8x128xi32>
    %c16_i32_19 = arith.constant 16 : i32
    %78 = vector.broadcast %c16_i32_19 : i32 to vector<8x128xi32>
    %79 = arith.shrsi %77, %78 : vector<8x128xi32>
    %c65535_i32_20 = arith.constant 65535 : i32
    %80 = vector.broadcast %c65535_i32_20 : i32 to vector<8x128xi32>
    %81 = arith.andi %79, %80 : vector<8x128xi32>
    %82 = arith.xori %77, %81 : vector<8x128xi32>
    %c-2048144789_i32_21 = arith.constant -2048144789 : i32
    %83 = vector.broadcast %c-2048144789_i32_21 : i32 to vector<8x128xi32>
    %84 = arith.muli %82, %83 : vector<8x128xi32>
    %c13_i32_22 = arith.constant 13 : i32
    %85 = vector.broadcast %c13_i32_22 : i32 to vector<8x128xi32>
    %86 = arith.shrsi %84, %85 : vector<8x128xi32>
    %c524287_i32_23 = arith.constant 524287 : i32
    %87 = vector.broadcast %c524287_i32_23 : i32 to vector<8x128xi32>
    %88 = arith.andi %86, %87 : vector<8x128xi32>
    %89 = arith.xori %84, %88 : vector<8x128xi32>
    %c-1028477387_i32_24 = arith.constant -1028477387 : i32
    %90 = vector.broadcast %c-1028477387_i32_24 : i32 to vector<8x128xi32>
    %91 = arith.muli %89, %90 : vector<8x128xi32>
    %c16_i32_25 = arith.constant 16 : i32
    %92 = vector.broadcast %c16_i32_25 : i32 to vector<8x128xi32>
    %93 = arith.shrsi %91, %92 : vector<8x128xi32>
    %c65535_i32_26 = arith.constant 65535 : i32
    %94 = vector.broadcast %c65535_i32_26 : i32 to vector<8x128xi32>
    %95 = arith.andi %93, %94 : vector<8x128xi32>
    %96 = arith.xori %91, %95 : vector<8x128xi32>
    %c8_i32 = arith.constant 8 : i32
    %97 = vector.broadcast %c8_i32 : i32 to vector<8x128xi32>
    %98 = arith.shrsi %54, %97 : vector<8x128xi32>
    %c16777215_i32 = arith.constant 16777215 : i32
    %99 = vector.broadcast %c16777215_i32 : i32 to vector<8x128xi32>
    %100 = arith.andi %98, %99 : vector<8x128xi32>
    %101 = arith.sitofp %100 : vector<8x128xi32> to vector<8x128xf32>
    %cst = arith.constant 5.000000e-01 : f32
    %102 = vector.broadcast %cst : f32 to vector<8x128xf32>
    %103 = arith.addf %101, %102 : vector<8x128xf32>
    %cst_27 = arith.constant 5.96046448E-8 : f32
    %104 = vector.broadcast %cst_27 : f32 to vector<8x128xf32>
    %105 = arith.mulf %103, %104 : vector<8x128xf32>
    %c8_i32_28 = arith.constant 8 : i32
    %106 = vector.broadcast %c8_i32_28 : i32 to vector<8x128xi32>
    %107 = arith.shrsi %96, %106 : vector<8x128xi32>
    %c16777215_i32_29 = arith.constant 16777215 : i32
    %108 = vector.broadcast %c16777215_i32_29 : i32 to vector<8x128xi32>
    %109 = arith.andi %107, %108 : vector<8x128xi32>
    %110 = arith.sitofp %109 : vector<8x128xi32> to vector<8x128xf32>
    %cst_30 = arith.constant 5.96046448E-8 : f32
    %111 = vector.broadcast %cst_30 : f32 to vector<8x128xf32>
    %112 = arith.mulf %110, %111 : vector<8x128xf32>
    %113 = math.log %105 : vector<8x128xf32>
    %cst_31 = arith.constant -2.000000e+00 : f32
    %114 = vector.broadcast %cst_31 : f32 to vector<8x128xf32>
    %115 = arith.mulf %114, %113 : vector<8x128xf32>
    %116 = math.sqrt %115 : vector<8x128xf32>
    %cst_32 = arith.constant 6.28318548 : f32
    %117 = vector.broadcast %cst_32 : f32 to vector<8x128xf32>
    %118 = arith.mulf %117, %112 : vector<8x128xf32>
    %119 = math.cos %118 : vector<8x128xf32>
    %120 = arith.mulf %116, %119 : vector<8x128xf32>
    %121 = math.sin %118 : vector<8x128xf32>
    %122 = arith.mulf %116, %121 : vector<8x128xf32>
    %123 = tpu.concatenate %120, %122 in 0 : vector<8x128xf32>, vector<8x128xf32> -> vector<16x128xf32>
    %cst_33 = arith.constant 31.622776 : f32
    %124 = vector.broadcast %cst_33 : f32 to vector<16x128xf32>
    %125 = arith.mulf %124, %123 : vector<16x128xf32>
    %cst_34 = arith.constant 0.000000e+00 : f32
    %126 = vector.broadcast %cst_34 : f32 to vector<16x128xf32>
    %127 = arith.addf %126, %125 : vector<16x128xf32>
    %c0_35 = arith.constant 0 : index
    %c0_36 = arith.constant 0 : index
    %128 = vector.load %arg3[%c0_35, %c0_36] : memref<16x128xf32, #tpu.memory_space<vmem>>, vector<16x128xf32>
    %129 = arith.addf %128, %127 : vector<16x128xf32>
    %c0_37 = arith.constant 0 : index
    %130 = memref.load %arg2[%c0_37] : memref<1xf32, #tpu.memory_space<smem>>
    %cst_38 = arith.constant 0.000000e+00 : f32
    %131 = vector.broadcast %cst_38 : f32 to vector<16x128xf32>
    %132 = arith.maximumf %129, %131 : vector<16x128xf32>
    %133 = vector.broadcast %130 : f32 to vector<16x128xf32>
    %134 = arith.minimumf %132, %133 : vector<16x128xf32>
    %c0_39 = arith.constant 0 : index
    %c0_40 = arith.constant 0 : index
    %135 = vector.load %arg4[%c0_39, %c0_40] : memref<16x128xf32, #tpu.memory_space<vmem>>, vector<16x128xf32>
    tpu.vector_store %arg4[%c0_39, %c0_40], %134 {strides = array<i32>} : memref<16x128xf32, #tpu.memory_space<vmem>>, vector<16x128xf32>,
    return
  }
  func.func @transform_0(%arg0: i32) -> i32 {
    %c0_i32 = arith.constant 0 : i32
    %c0_i32_0 = arith.constant 0 : i32
    return %c0_i32 : i32
  }
  func.func @transform_1(%arg0: i32) -> i32 {
    %c0_i32 = arith.constant 0 : i32
    %c0_i32_0 = arith.constant 0 : i32
    return %c0_i32 : i32
  }
  func.func @transform_2(%arg0: i32) -> (i32, i32) {
    %c0_i32 = arith.constant 0 : i32
    %c0_i32_0 = arith.constant 0 : i32
    return %arg0, %c0_i32 : i32, i32
  }
  func.func @transform_3(%arg0: i32) -> (i32, i32) {
    %c0_i32 = arith.constant 0 : i32
    %c0_i32_0 = arith.constant 0 : i32
    return %arg0, %c0_i32 : i32, i32
  }
}

</mosaic_0001>

<llo_original>
// kernel: tpu_custom_call.1
$region0: #{tpu_custom_call.1}
  #allocation0 [shape = 'u32[]', space=smem, size = 0x4, offset = 0x4, fixed_abs, tag = 'smem constant byte address 0x4 - core index']
  #allocation1 [shape = 'u32[144,128]{1,0:T(1,128)}', space=vmem, size = 0x12000, scoped, tag = 'internal scratch']
  #allocation2 [shape = 's32[1]{0:T(128)S(6)}', space=smem, size = 0x200, scoped, tag = 'scoped memory for tpu_custom_call.1']
  #allocation3 [shape = 'f32[1]{0:T(128)S(6)}', space=smem, size = 0x200, scoped, tag = 'scoped memory for tpu_custom_call.1']
  %s0 = inlined_call_operand.<no memory space> [shape: s32[1], index: 0, kind: input, shape index: {}]
  %s1 = inlined_call_operand.<no memory space> [shape: f32[1], index: 1, kind: input, shape index: {}]
  %s2 = inlined_call_operand.hbm [shape: f32[16,128], index: 2, kind: input, shape index: {}]
  %s3 = inlined_call_operand.hbm [shape: f32[16,128], index: 3, kind: output, shape index: {}]
  %s4 = sld [smem:[#allocation0]]
  $region26: #{tpu_custom_call.1} parent=0
    _
  %s6 = ssub.s32 1, %s4
  %s7 = scalar_select 0, %s6, %s4
  %8 = sst [smem:[#allocation2]] %s0
  %9 = sst [smem:[#allocation3]] %s1
  $region1: #{tpu_custom_call.1} parent=0
    #allocation4 [shape = 'u8[8192]{0}', space=vmem, size = 0x2000, scoped, tag = 'input window, operand 2, single buffered']
    #allocation5 [shape = 's32[1]{0}', space=sflag, size = 0x4, scoped, tag = 'scoped memory for tpu_custom_call.1']
    #allocation6 [shape = 's32[1]{0}', space=sflag, size = 0x4, scoped, tag = 'scoped memory for tpu_custom_call.1']
    #allocation7 [shape = 'u8[8192]{0}', space=vmem, size = 0x2000, scoped, tag = 'output window, operand 0, single buffered']
    %10 = vsyncpa [#allocation5], 0
    %11 = vsyncpa [#allocation6], 0
    // Predicated region
    $region2: #{tpu_custom_call.1} parent=1 // pred_check
      _
    $region3: #{tpu_custom_call.1} parent=1 // pred_check_branch
      %13 = sbr.rel (0) target = $region5
    $region4: #{tpu_custom_call.1} parent=1 // pred_region
      _
    $region5: #{tpu_custom_call.1} parent=1 // pred_fallthru
      _
    // Predicated region
    $region6: #{tpu_custom_call.1} parent=1 // pred_check
      _
    $region7: #{tpu_custom_call.1} parent=1 // pred_check_branch
      %15 = sbr.rel (0) target = $region9
    $region8: #{tpu_custom_call.1} parent=1 // pred_region
      _
    $region9: #{tpu_custom_call.1} parent=1 // pred_fallthru
      _
    // Predicated region
    $region10: #{tpu_custom_call.1} parent=1 // pred_check
      _
    $region11: #{tpu_custom_call.1} parent=1 // pred_check_branch
      %17 = sbr.rel (0) target = $region13
    $region12: #{tpu_custom_call.1} parent=1 // pred_region
      %s19 = ssub.s32 256, 256
      %20 = vsyncadd [#allocation5], %s19
      %s21 = sshll.u32 [#allocation4], 4
      %s22 = int_to_ptr.vmem [resolvable:$true] %s21
      %27 = dma.hbm_to_vmem [thread:$0]  %s2, 256, %s22, [#allocation5], 128, 128, 8
    $region13: #{tpu_custom_call.1} parent=1 // pred_fallthru
      _
    // Predicated region
    $region14: #{tpu_custom_call.1} parent=1 // pred_check
      _
    $region15: #{tpu_custom_call.1} parent=1 // pred_check_branch
      %29 = sbr.rel (0) target = $region17
    $region16: #{tpu_custom_call.1} parent=1 // pred_region
      %30 = dma.done [#allocation5], 256
    $region17: #{tpu_custom_call.1} parent=1 // pred_fallthru
      _
    %v31 = vlaneseq
    %v32 = vshrl.u32 %v31, 7
    %v33 = vlaneseq
    %v34 = vand.u32 %v33, 127
    %v35 = vmul.u32 %v32, 128
    %v36 = vadd.s32 %v35, %v34
    %s37 = smul.u32 0, 1024
    %v38 = vstv %s37
    %v39 = vadd.s32 %v36, %v38
    %s40 = sld [smem:[#allocation2]]
    %s41 = sadd.s32 %s40, 1
    %s42 = smul.u32 %s41, 2654435769
    %s43 = sadd.s32 %s40, 2
    %s44 = smul.u32 %s43, 2654435769
    %v45 = vstv %s42
    %v46 = vxor.u32 %v39, %v45
    %v47 = vshra.s32 %v46, 16
    %v48 = vand.u32 %v47, 65535
    %v49 = vxor.u32 %v46, %v48
    %v50 = vmul.u32 %v49, 2246822507
    %v51 = vshra.s32 %v50, 13
    %v52 = vand.u32 %v51, 524287
    %v53 = vxor.u32 %v50, %v52
    %v54 = vmul.u32 %v53, 3266489909
    %v55 = vshra.s32 %v54, 16
    %v56 = vand.u32 %v55, 65535
    %v57 = vxor.u32 %v54, %v56
    %v58 = vadd.s32 %v57, %v45
    %v59 = vshra.s32 %v58, 16
    %v60 = vand.u32 %v59, 65535
    %v61 = vxor.u32 %v58, %v60
    %v62 = vmul.u32 %v61, 2246822507
    %v63 = vshra.s32 %v62, 13
    %v64 = vand.u32 %v63, 524287
    %v65 = vxor.u32 %v62, %v64
    %v66 = vmul.u32 %v65, 3266489909
    %v67 = vshra.s32 %v66, 16
    %v68 = vand.u32 %v67, 65535
    %v69 = vxor.u32 %v66, %v68
    %v70 = vstv %s44
    %v71 = vxor.u32 %v39, %v70
    %v72 = vshra.s32 %v71, 16
    %v73 = vand.u32 %v72, 65535
    %v74 = vxor.u32 %v71, %v73
    %v75 = vmul.u32 %v74, 2246822507
    %v76 = vshra.s32 %v75, 13
    %v77 = vand.u32 %v76, 524287
    %v78 = vxor.u32 %v75, %v77
    %v79 = vmul.u32 %v78, 3266489909
    %v80 = vshra.s32 %v79, 16
    %v81 = vand.u32 %v80, 65535
    %v82 = vxor.u32 %v79, %v81
    %v83 = vadd.s32 %v82, %v70
    %v84 = vshra.s32 %v83, 16
    %v85 = vand.u32 %v84, 65535
    %v86 = vxor.u32 %v83, %v85
    %v87 = vmul.u32 %v86, 2246822507
    %v88 = vshra.s32 %v87, 13
    %v89 = vand.u32 %v88, 524287
    %v90 = vxor.u32 %v87, %v89
    %v91 = vmul.u32 %v90, 3266489909
    %v92 = vshra.s32 %v91, 16
    %v93 = vand.u32 %v92, 65535
    %v94 = vxor.u32 %v91, %v93
    %v95 = vshra.s32 %v69, 8
    %v96 = vand.u32 %v95, 16777215
    %v97 = vcvt.s32.f32 %v96
    %v98 = vadd.f32 %v97, 0.5
    %v99 = vmul.f32 %v98, 5.9604645e-08
    %v100 = vshra.s32 %v94, 8
    %v101 = vand.u32 %v100, 16777215
    %v102 = vcvt.s32.f32 %v101
    %v103 = vmul.f32 %v102, 5.9604645e-08
    %v104 = vlog2.pop %v99
    %v105 = vmul.f32 %v104, 0.6931472
    %v106 = vmul.f32 %v105, -2.0
    %v107 = vrsqrt.pop %v106
    %v108 = vmul.f32 %v106, %v107
    %vm109 = vcmp.eq.f32.partialorder %v106, inf
    %v110 = vsel %vm109, %v106, %v108
    %vm111 = vcmp.eq.f32.partialorder %v106, 0.0
    %v112 = vand.u32 %v106, 2147483648
    %v113 = vsel %vm111, %v112, %v110
    %v114 = vmul.f32 %v103, 6.2831855
    %v115 = vand.u32 2147483647, %v114
    %vm116 = vcmp.le.f32.partialorder %v115, 0.7853982
    %vm117 = vcmp.lt.s32.totalorder %v114, 0
    %v118 = vand.u32 %v114, 2139095040
    %v119 = vshrl.u32 %v118, 23
    %v120 = vsub.s32 %v119, 127
    %v121 = vand.u32 2147483647, %v114
    %v122 = vand.u32 %v121, 8388607
    %v123 = vor.u32 %v122, 8388608
    %v124 = vsub.s32 0, %v123
    %v125 = vadd.s32 %v120, 1
    %vm126 = vcmp.gt.s32.totalorder %v125, 0
    %v127 = vsel %vm126, %v125, 0
    %v128 = vshrl.u32 %v127, 5
    %v129 = vand.u32 %v127, 31
    %v130 = vsub.s32 32, %v129
    %v131 = vshrl.u32 683565275, %v130
    %v132 = vshll.u32 683565275, %v129
    %v133 = vshrl.u32 2475754826, %v130
    %v134 = vor.u32 %v132, %v133
    %v135 = vshll.u32 2475754826, %v129
    %v136 = vshrl.u32 2131351028, %v130
    %v137 = vor.u32 %v135, %v136
    %v138 = vshll.u32 2131351028, %v129
    %v139 = vshrl.u32 2102212464, %v130
    %v140 = vor.u32 %v138, %v139
    %v141 = vshll.u32 2102212464, %v129
    %v142 = vshrl.u32 920167782, %v130
    %v143 = vor.u32 %v141, %v142
    %v144 = vshll.u32 920167782, %v129
    %v145 = vshrl.u32 1326507024, %v130
    %v146 = vor.u32 %v144, %v145
    %vm147 = vcmp.lt.s32.totalorder %v128, 1
    %vm148 = vcmp.lt.s32.totalorder %v128, 2
    %vm149 = vcmp.lt.s32.totalorder %v128, 3
    %vm150 = vcmp.lt.s32.totalorder %v128, 4
    %v151 = vsel %vm147, %v131, %v134
    %v152 = vsel %vm150, %v140, 2102212464
    %v153 = vsel %vm149, %v137, %v152
    %v154 = vsel %vm148, %v151, %v153
    %v155 = vsel %vm147, %v134, %v137
    %v156 = vsel %vm150, %v143, 920167782
    %v157 = vsel %vm149, %v140, %v156
    %v158 = vsel %vm148, %v155, %v157
    %v159 = vsel %vm147, %v137, %v140
    %v160 = vsel %vm150, %v146, 1326507024
    %v161 = vsel %vm149, %v143, %v160
    %v162 = vsel %vm148, %v159, %v161
    %v163 = vshll.u32 %v123, 8
    %v164 = vmul.u32.u64.compose %v163, %v162
    %v165 = vextract.low.u32 %v164
    %v166 = vextract.high.u32 %v164
    %v167 = vmul.u32.u64.compose %v163, %v158
    %v168 = vextract.low.u32 %v167
    %v169 = vextract.high.u32 %v167
    %v170 = vmul.u32 %v163, %v154
    %v171 = vadd.s32 %v166, %v168
    %vm172 = vc.u32 %v166, %v168
    %v173 = vadd.s32 %v169, 1
    %v174 = vsel %vm172, %v173, %v169
    %v175 = vadd.s32 %v170, %v174
    %v176 = vadd.s32 %v175, 536870912
    %v177 = vshrl.u32 %v176, 30
    %v178 = vshll.u32 %v177, 30
    %v179 = vsub.s32 %v175, %v178
    %vm180 = vcmp.lt.s32.totalorder %v179, 0
    %v181 = vsub.s32 0, %v179
    %v182 = vsel %vm180, %v181, %v179
    %v183 = vclz %v182
    %v184 = vsub.s32 %v183, 2
    %vm185 = vcmp.gt.s32.totalorder 0, %v184
    %v186 = vsel %vm185, 0, %v184
    %v187 = vsub.s32 32, %v186
    %v188 = vshll.u32 %v179, %v186
    %v189 = vshrl.u32 %v171, %v187
    %v190 = vor.u32 %v188, %v189
    %v191 = vsub.s32 4294967266, %v186
    %v192 = vadd.s32 %v191, 127
    %v193 = vshll.u32 %v192, 23
    %v194 = vor.u32 4788187, %v193
    %v195 = vand.u32 2147483647, %v194
    %v197 = vcvt.s32.f32 %v190
    %v198 = vmul.f32 %v197, %v195
    %v199 = vxor.u32 %v198, 2147483648
    %v200 = vsel %vm117, %v199, %v198
    %v201 = vsub.s32 4, %v177
    %v202 = vsel %vm117, %v201, %v177
    %v203 = vsel %vm116, %v114, %v200
    %v204 = vsel %vm116, 0, %v202
    %v205 = vcosq.f32.pop %v203
    %v206 = vsinq.f32.pop %v203
    %vm207 = vweird.f32 %v114
    %v208 = vand.u32 %v204, 3
    %vm209 = vcmp.lt.s32.totalorder %v208, 2
    %vm210 = vcmp.eq.s32.totalorder %v208, 0
    %v211 = vxor.u32 %v206, 2147483648
    %v212 = vsel %vm210, %v205, %v211
    %vm213 = vcmp.eq.s32.totalorder %v208, 2
    %v214 = vxor.u32 %v205, 2147483648
    %v215 = vsel %vm213, %v214, %v206
    %v216 = vsel %vm209, %v212, %v215
    %v217 = vsel %vm207, nan, %v216
    %v218 = vmul.f32 %v113, %v217
    %v219 = vand.u32 2147483647, %v114
    %vm220 = vcmp.le.f32.partialorder %v219, 0.7853982
    %vm221 = vcmp.lt.s32.totalorder %v114, 0
    %v222 = vand.u32 %v114, 2139095040
    %v223 = vshrl.u32 %v222, 23
    %v224 = vsub.s32 %v223, 127
    %v225 = vand.u32 2147483647, %v114
    %v226 = vand.u32 %v225, 8388607
    %v227 = vor.u32 %v226, 8388608
    %v228 = vsub.s32 0, %v227
    %v229 = vadd.s32 %v224, 1
    %vm230 = vcmp.gt.s32.totalorder %v229, 0
    %v231 = vsel %vm230, %v229, 0
    %v232 = vshrl.u32 %v231, 5
    %v233 = vand.u32 %v231, 31
    %v234 = vsub.s32 32, %v233
    %v235 = vshrl.u32 683565275, %v234
    %v236 = vshll.u32 683565275, %v233
    %v237 = vshrl.u32 2475754826, %v234
    %v238 = vor.u32 %v236, %v237
    %v239 = vshll.u32 2475754826, %v233
    %v240 = vshrl.u32 2131351028, %v234
    %v241 = vor.u32 %v239, %v240
    %v242 = vshll.u32 2131351028, %v233
    %v243 = vshrl.u32 2102212464, %v234
    %v244 = vor.u32 %v242, %v243
    %v245 = vshll.u32 2102212464, %v233
    %v246 = vshrl.u32 920167782, %v234
    %v247 = vor.u32 %v245, %v246
    %v248 = vshll.u32 920167782, %v233
    %v249 = vshrl.u32 1326507024, %v234
    %v250 = vor.u32 %v248, %v249
    %vm251 = vcmp.lt.s32.totalorder %v232, 1
    %vm252 = vcmp.lt.s32.totalorder %v232, 2
    %vm253 = vcmp.lt.s32.totalorder %v232, 3
    %vm254 = vcmp.lt.s32.totalorder %v232, 4
    %v255 = vsel %vm251, %v235, %v238
    %v256 = vsel %vm254, %v244, 2102212464
    %v257 = vsel %vm253, %v241, %v256
    %v258 = vsel %vm252, %v255, %v257
    %v259 = vsel %vm251, %v238, %v241
    %v260 = vsel %vm254, %v247, 920167782
    %v261 = vsel %vm253, %v244, %v260
    %v262 = vsel %vm252, %v259, %v261
    %v263 = vsel %vm251, %v241, %v244
    %v264 = vsel %vm254, %v250, 1326507024
    %v265 = vsel %vm253, %v247, %v264
    %v266 = vsel %vm252, %v263, %v265
    %v267 = vshll.u32 %v227, 8
    %v268 = vmul.u32.u64.compose %v267, %v266
    %v269 = vextract.low.u32 %v268
    %v270 = vextract.high.u32 %v268
    %v271 = vmul.u32.u64.compose %v267, %v262
    %v272 = vextract.low.u32 %v271
    %v273 = vextract.high.u32 %v271
    %v274 = vmul.u32 %v267, %v258
    %v275 = vadd.s32 %v270, %v272
    %vm276 = vc.u32 %v270, %v272
    %v277 = vadd.s32 %v273, 1
    %v278 = vsel %vm276, %v277, %v273
    %v279 = vadd.s32 %v274, %v278
    %v280 = vadd.s32 %v279, 536870912
    %v281 = vshrl.u32 %v280, 30
    %v282 = vshll.u32 %v281, 30
    %v283 = vsub.s32 %v279, %v282
    %vm284 = vcmp.lt.s32.totalorder %v283, 0
    %v285 = vsub.s32 0, %v283
    %v286 = vsel %vm284, %v285, %v283
    %v287 = vclz %v286
    %v288 = vsub.s32 %v287, 2
    %vm289 = vcmp.gt.s32.totalorder 0, %v288
    %v290 = vsel %vm289, 0, %v288
    %v291 = vsub.s32 32, %v290
    %v292 = vshll.u32 %v283, %v290
    %v293 = vshrl.u32 %v275, %v291
    %v294 = vor.u32 %v292, %v293
    %v295 = vsub.s32 4294967266, %v290
    %v296 = vadd.s32 %v295, 127
    %v297 = vshll.u32 %v296, 23
    %v298 = vor.u32 4788187, %v297
    %v299 = vand.u32 2147483647, %v298
    %v301 = vcvt.s32.f32 %v294
    %v302 = vmul.f32 %v301, %v299
    %v303 = vxor.u32 %v302, 2147483648
    %v304 = vsel %vm221, %v303, %v302
    %v305 = vsub.s32 4, %v281
    %v306 = vsel %vm221, %v305, %v281
    %v307 = vsel %vm220, %v114, %v304
    %v308 = vsel %vm220, 0, %v306
    %v309 = vcosq.f32.pop %v307
    %v310 = vsinq.f32.pop %v307
    %vm311 = vweird.f32 %v114
    %v312 = vadd.s32 %v308, 3
    %v313 = vand.u32 %v312, 3
    %vm314 = vcmp.lt.s32.totalorder %v313, 2
    %vm315 = vcmp.eq.s32.totalorder %v313, 0
    %v316 = vxor.u32 %v310, 2147483648
    %v317 = vsel %vm315, %v309, %v316
    %vm318 = vcmp.eq.s32.totalorder %v313, 2
    %v319 = vxor.u32 %v309, 2147483648
    %v320 = vsel %vm318, %v319, %v310
    %v321 = vsel %vm314, %v317, %v320
    %v322 = vsel %vm311, nan, %v321
    %v323 = vmul.f32 %v113, %v322
    %v324 = vmul.f32 %v218, 31.622776
    %v325 = vmul.f32 %v323, 31.622776
    %v326 = vadd.f32 %v324, 0.0
    %v327 = vadd.f32 %v325, 0.0
    %v328 = vld [vmem:[#allocation4] sm:$0xff]
    %v329 = vld [vmem:[#allocation4 + $0x8] sm:$0xff]
    %v330 = vadd.f32 %v328, %v326
    %v331 = vadd.f32 %v329, %v327
    %s332 = sld [smem:[#allocation3]]
    %v333 = vmax.f32 %v330, 0.0
    %v334 = vmax.f32 %v331, 0.0
    %v335 = vstv %s332
    %v336 = vmin.f32 %v333, %v335
    %v337 = vmin.f32 %v334, %v335
    %338 = vst [vmem:[#allocation7] sm:$0xff] %v336
    %339 = vst [vmem:[#allocation7 + $0x8] sm:$0xff] %v337
    // Predicated region
    $region18: #{tpu_custom_call.1} parent=1 // pred_check
      _
    $region19: #{tpu_custom_call.1} parent=1 // pred_check_branch
      %341 = sbr.rel (0) target = $region21
    $region20: #{tpu_custom_call.1} parent=1 // pred_region
      %s343 = ssub.s32 256, 256
      %344 = vsyncadd [#allocation6], %s343
      %s345 = sshll.u32 [#allocation7], 4
      %s346 = int_to_ptr.vmem [resolvable:$true] %s345
      %351 = dma.vmem_to_hbm [thread:$0]  %s346, 256, %s3, [#allocation6], 128, 128, 8
    $region21: #{tpu_custom_call.1} parent=1 // pred_fallthru
      _
    // Predicated region
    $region22: #{tpu_custom_call.1} parent=1 // pred_check
      _
    $region23: #{tpu_custom_call.1} parent=1 // pred_check_branch
      %353 = sbr.rel (0) target = $region25
    $region24: #{tpu_custom_call.1} parent=1 // pred_region
      %354 = dma.done [#allocation6], 256
    $region25: #{tpu_custom_call.1} parent=1 // pred_fallthru
      _
    %355 = vsyncpa [#allocation5], 1
    %356 = vsyncpa [#allocation6], 1

</llo_original>
